<compile_context>
chip_gen: v7x
topology: tpu7x:2x2x1
jax: 0.10.0
libtpu: 0.0.40
codegen_flags: <defaults>
</compile_context>

<pallas_src>
import jax
import jax.numpy as jnp
from jax.experimental import pallas as pl
from jax.experimental.pallas import tpu as pltpu


def _round_up(x, m):
    return (x + m - 1) // m * m


def mlp_kernel(x_ref, w1_ref, b1_ref, w2_ref, b2_ref, w3_ref, b3_ref, o_ref):
    # x_ref: (15, TB) ; weights (out, in) ; biases (out, 1)
    x = x_ref[...]
    h1 = jnp.dot(w1_ref[...], x, preferred_element_type=jnp.float32)      # (10, TB)
    h1 = jax.nn.sigmoid(h1 + b1_ref[...])
    h2 = jnp.dot(w2_ref[...], h1, preferred_element_type=jnp.float32)     # (6, TB)
    h2 = jax.nn.sigmoid(h2 + b2_ref[...])
    h3 = jnp.dot(w3_ref[...], h2, preferred_element_type=jnp.float32)     # (1, TB)
    o_ref[...] = jax.nn.sigmoid(h3 + b3_ref[...]).astype(o_ref.dtype)


def mlp_forward(x, params, *, tb=512):
    """x: (B, 15) float32 -> (B, 1) float32 (same semantics as the torch Model)."""
    w1, b1, w2, b2, w3, b3 = params  # (10,15),(10,1),(6,10),(6,1),(1,6),(1,1)
    B = x.shape[0]

    # Lane-major layout: (features, batch).  Pad batch to a lane-aligned tile.
    xt = x.T                                   # (15, B)
    TB = min(tb, _round_up(B, 128))            # tile of lanes, multiple of 128
    Bp = _round_up(B, TB)
    if Bp != B:
        xt = jnp.pad(xt, ((0, 0), (0, Bp - B)))
    grid = (Bp // TB,)

    # Weights/biases: full-array blocks, constant index_map -> resident in VMEM.
    const = lambda arr: pl.BlockSpec(arr.shape, lambda i: (0, 0))

    out = pl.pallas_call(
        mlp_kernel,
        out_shape=jax.ShapeDtypeStruct((1, Bp), jnp.float32),
        grid=grid,
        in_specs=[
            pl.BlockSpec((15, TB), lambda i: (0, i)),   # x tile: batch on lanes
            const(w1), const(b1),
            const(w2), const(b2),
            const(w3), const(b3),
        ],
        out_specs=pl.BlockSpec((1, TB), lambda i: (0, i)),  # lane-dense output
        compiler_params=pltpu.CompilerParams(
            dimension_semantics=("parallel",),
        ),
    )(xt, w1, b1, w2, b2, w3, b3)

    return out[:, :B].T                         # (B, 1)


def init_params(key):
    # torch.nn.Linear default init: U(-1/sqrt(fan_in), 1/sqrt(fan_in)),
    # weight stored (out_features, in_features), bias kept as (out, 1) for
    # lane-broadcast inside the kernel.
    def linear(key, fan_in, fan_out):
        kw, kb = jax.random.split(key)
        bound = 1.0 / jnp.sqrt(float(fan_in))
        w = jax.random.uniform(kw, (fan_out, fan_in), jnp.float32, -bound, bound)
        b = jax.random.uniform(kb, (fan_out, 1), jnp.float32, -bound, bound)
        return w, b

    k1, k2, k3 = jax.random.split(key, 3)
    w1, b1 = linear(k1, 15, 10)
    w2, b2 = linear(k2, 10, 6)
    w3, b3 = linear(k3, 6, 1)
    return (w1, b1, w2, b2, w3, b3)


def reference_forward(x, params):
    w1, b1, w2, b2, w3, b3 = params
    h = jax.nn.sigmoid(x @ w1.T + b1.T)
    h = jax.nn.sigmoid(h @ w2.T + b2.T)
    return jax.nn.sigmoid(h @ w3.T + b3.T)


if __name__ == "__main__":
    key = jax.random.PRNGKey(0)
    kx, kp, kx2 = jax.random.split(key, 3)
    params = init_params(kp)

    # Small batch (matches the original module's usage).
    B = 8
    x = jax.random.normal(kx, (B, 15), jnp.float32)
    out = jax.block_until_ready(mlp_forward(x, params))
    ref = reference_forward(x, params)
    assert out.shape == (B, 1)
    assert jnp.allclose(out, ref, atol=1e-5, rtol=1e-5)

    # Larger batch that exercises the batch grid (multiple pipelined tiles).
    B2 = 1024
    x2 = jax.random.normal(kx2, (B2, 15), jnp.float32)
    out2 = jax.block_until_ready(mlp_forward(x2, params))
    ref2 = reference_forward(x2, params)
    assert out2.shape == (B2, 1)
    assert jnp.allclose(out2, ref2, atol=1e-5, rtol=1e-5)

    print("KERNEL_OK")
</pallas_src>

<mosaic_0001>
module attributes {stable_mosaic.version = 11 : i64} {
  func.func @mlp_kernel(%arg0: i32, %arg1: memref<15x128xf32, #tpu.memory_space<vmem>>, %arg2: memref<10x15xf32, #tpu.memory_space<vmem>>, %arg3: memref<10x1xf32, #tpu.memory_space<vmem>>, %arg4: memref<6x10xf32, #tpu.memory_space<vmem>>, %arg5: memref<6x1xf32, #tpu.memory_space<vmem>>, %arg6: memref<1x6xf32, #tpu.memory_space<vmem>>, %arg7: memref<1x1xf32, #tpu.memory_space<vmem>>, %arg8: memref<1x128xf32, #tpu.memory_space<vmem>>) attributes {dimension_semantics = [#tpu.dimension_semantics<parallel>], iteration_bounds = array<i64: 1>, scalar_prefetch = 0 : i64, scratch_operands = 0 : i64, tpu.core_type = #tpu.core_type<tc>, window_params = [{transform_indices = @transform_0, window_bounds = array<i64: 15, 128>}, {pipeline_mode = #tpu.pipeline_mode<synchronous>, transform_indices = @transform_1, window_bounds = array<i64: 10, 15>}, {pipeline_mode = #tpu.pipeline_mode<synchronous>, transform_indices = @transform_2, window_bounds = array<i64: 10, 1>}, {pipeline_mode = #tpu.pipeline_mode<synchronous>, transform_indices = @transform_3, window_bounds = array<i64: 6, 10>}, {pipeline_mode = #tpu.pipeline_mode<synchronous>, transform_indices = @transform_4, window_bounds = array<i64: 6, 1>}, {pipeline_mode = #tpu.pipeline_mode<synchronous>, transform_indices = @transform_5, window_bounds = array<i64: 1, 6>}, {pipeline_mode = #tpu.pipeline_mode<synchronous>, transform_indices = @transform_6, window_bounds = array<i64: 1, 1>}, {transform_indices = @transform_7, window_bounds = array<i64: 1, 128>}]} {
    %c0 = arith.constant 0 : index
    %c0_0 = arith.constant 0 : index
    %0 = vector.load %arg1[%c0, %c0_0] : memref<15x128xf32, #tpu.memory_space<vmem>>, vector<15x128xf32>
    %c0_1 = arith.constant 0 : index
    %c0_2 = arith.constant 0 : index
    %1 = vector.load %arg2[%c0_1, %c0_2] : memref<10x15xf32, #tpu.memory_space<vmem>>, vector<10x15xf32>
    %cst = arith.constant dense<0.000000e+00> : vector<10x128xf32>
    %2 = tpu.matmul %1, %0, %cst {dimension_numbers = #tpu.dot_dimension_numbers<[1], [0], [0], [1], [0, 0, 1, 1], [], []>} : vector<10x15xf32>, vector<15x128xf32>, vector<10x128xf32> -> vector<10x128xf32>
    %c0_3 = arith.constant 0 : index
    %c0_4 = arith.constant 0 : index
    %3 = vector.load %arg3[%c0_3, %c0_4] : memref<10x1xf32, #tpu.memory_space<vmem>>, vector<10x1xf32>
    %4 = vector.broadcast %3 : vector<10x1xf32> to vector<10x128xf32>
    %5 = arith.addf %2, %4 : vector<10x128xf32>
    %6 = arith.negf %5 : vector<10x128xf32>
    %7 = math.exp %6 : vector<10x128xf32>
    %cst_5 = arith.constant 1.000000e+00 : f32
    %8 = vector.broadcast %cst_5 : f32 to vector<10x128xf32>
    %9 = arith.addf %8, %7 : vector<10x128xf32>
    %10 = arith.divf %8, %9 : vector<10x128xf32>
    %c0_6 = arith.constant 0 : index
    %c0_7 = arith.constant 0 : index
    %11 = vector.load %arg4[%c0_6, %c0_7] : memref<6x10xf32, #tpu.memory_space<vmem>>, vector<6x10xf32>
    %cst_8 = arith.constant dense<0.000000e+00> : vector<6x128xf32>
    %12 = tpu.matmul %11, %10, %cst_8 {dimension_numbers = #tpu.dot_dimension_numbers<[1], [0], [0], [1], [0, 0, 1, 1], [], []>} : vector<6x10xf32>, vector<10x128xf32>, vector<6x128xf32> -> vector<6x128xf32>
    %c0_9 = arith.constant 0 : index
    %c0_10 = arith.constant 0 : index
    %13 = vector.load %arg5[%c0_9, %c0_10] : memref<6x1xf32, #tpu.memory_space<vmem>>, vector<6x1xf32>
    %14 = vector.broadcast %13 : vector<6x1xf32> to vector<6x128xf32>
    %15 = arith.addf %12, %14 : vector<6x128xf32>
    %16 = arith.negf %15 : vector<6x128xf32>
    %17 = math.exp %16 : vector<6x128xf32>
    %cst_11 = arith.constant 1.000000e+00 : f32
    %18 = vector.broadcast %cst_11 : f32 to vector<6x128xf32>
    %19 = arith.addf %18, %17 : vector<6x128xf32>
    %20 = arith.divf %18, %19 : vector<6x128xf32>
    %c0_12 = arith.constant 0 : index
    %c0_13 = arith.constant 0 : index
    %21 = vector.load %arg6[%c0_12, %c0_13] : memref<1x6xf32, #tpu.memory_space<vmem>>, vector<1x6xf32>
    %cst_14 = arith.constant dense<0.000000e+00> : vector<1x128xf32>
    %22 = tpu.matmul %21, %20, %cst_14 {dimension_numbers = #tpu.dot_dimension_numbers<[1], [0], [0], [1], [0, 0, 1, 1], [], []>} : vector<1x6xf32>, vector<6x128xf32>, vector<1x128xf32> -> vector<1x128xf32>
    %c0_15 = arith.constant 0 : index
    %c0_16 = arith.constant 0 : index
    %23 = vector.load %arg7[%c0_15, %c0_16] : memref<1x1xf32, #tpu.memory_space<vmem>>, vector<1x1xf32>
    %24 = vector.broadcast %23 : vector<1x1xf32> to vector<1x128xf32>
    %25 = arith.addf %22, %24 : vector<1x128xf32>
    %26 = arith.negf %25 : vector<1x128xf32>
    %27 = math.exp %26 : vector<1x128xf32>
    %cst_17 = arith.constant 1.000000e+00 : f32
    %28 = vector.broadcast %cst_17 : f32 to vector<1x128xf32>
    %29 = arith.addf %28, %27 : vector<1x128xf32>
    %30 = arith.divf %28, %29 : vector<1x128xf32>
    %c0_18 = arith.constant 0 : index
    %c0_19 = arith.constant 0 : index
    %31 = vector.load %arg8[%c0_18, %c0_19] : memref<1x128xf32, #tpu.memory_space<vmem>>, vector<1x128xf32>
    tpu.vector_store %arg8[%c0_18, %c0_19], %30 {strides = array<i32>} : memref<1x128xf32, #tpu.memory_space<vmem>>, vector<1x128xf32>,
    return
  }
  func.func @transform_0(%arg0: i32) -> (i32, i32) {
    %c0_i32 = arith.constant 0 : i32
    %c0_i32_0 = arith.constant 0 : i32
    return %c0_i32, %arg0 : i32, i32
  }
  func.func @transform_1(%arg0: i32) -> (i32, i32) {
    %c0_i32 = arith.constant 0 : i32
    %c0_i32_0 = arith.constant 0 : i32
    %c0_i32_1 = arith.constant 0 : i32
    return %c0_i32, %c0_i32_0 : i32, i32
  }
  func.func @transform_2(%arg0: i32) -> (i32, i32) {
    %c0_i32 = arith.constant 0 : i32
    %c0_i32_0 = arith.constant 0 : i32
    %c0_i32_1 = arith.constant 0 : i32
    return %c0_i32, %c0_i32_0 : i32, i32
  }
  func.func @transform_3(%arg0: i32) -> (i32, i32) {
    %c0_i32 = arith.constant 0 : i32
    %c0_i32_0 = arith.constant 0 : i32
    %c0_i32_1 = arith.constant 0 : i32
    return %c0_i32, %c0_i32_0 : i32, i32
  }
  func.func @transform_4(%arg0: i32) -> (i32, i32) {
    %c0_i32 = arith.constant 0 : i32
    %c0_i32_0 = arith.constant 0 : i32
    %c0_i32_1 = arith.constant 0 : i32
    return %c0_i32, %c0_i32_0 : i32, i32
  }
  func.func @transform_5(%arg0: i32) -> (i32, i32) {
    %c0_i32 = arith.constant 0 : i32
    %c0_i32_0 = arith.constant 0 : i32
    %c0_i32_1 = arith.constant 0 : i32
    return %c0_i32, %c0_i32_0 : i32, i32
  }
  func.func @transform_6(%arg0: i32) -> (i32, i32) {
    %c0_i32 = arith.constant 0 : i32
    %c0_i32_0 = arith.constant 0 : i32
    %c0_i32_1 = arith.constant 0 : i32
    return %c0_i32, %c0_i32_0 : i32, i32
  }
  func.func @transform_7(%arg0: i32) -> (i32, i32) {
    %c0_i32 = arith.constant 0 : i32
    %c0_i32_0 = arith.constant 0 : i32
    return %c0_i32, %arg0 : i32, i32
  }
}

</mosaic_0001>

<llo_original>
// kernel: tpu_custom_call.1
$region0: #{tpu_custom_call.1}
  #allocation0 [shape = 'u32[]', space=smem, size = 0x4, offset = 0x4, fixed_abs, tag = 'smem constant byte address 0x4 - core index']
  #allocation1 [shape = 'u32[144,128]{1,0:T(1,128)}', space=vmem, size = 0x12000, scoped, tag = 'internal scratch']
  #allocation2 [shape = 'f32[1,1]{1,0:T(1,128)S(1)}', space=vmem, size = 0x200, scoped, tag = 'scoped memory for tpu_custom_call.1']
  %s0 = inlined_call_operand.vmem [shape: f32[15,128], index: 0, kind: input, shape index: {}]
  %s1 = inlined_call_operand.vmem [shape: f32[10,15], index: 1, kind: input, shape index: {}]
  %s2 = inlined_call_operand.vmem [shape: f32[10,1], index: 2, kind: input, shape index: {}]
  %s3 = inlined_call_operand.vmem [shape: f32[6,10], index: 3, kind: input, shape index: {}]
  %s4 = inlined_call_operand.vmem [shape: f32[6,1], index: 4, kind: input, shape index: {}]
  %s5 = inlined_call_operand.vmem [shape: f32[1,6], index: 5, kind: input, shape index: {}]
  %s6 = inlined_call_operand.<no memory space> [shape: f32[1,1], index: 6, kind: input, shape index: {}]
  %s7 = inlined_call_operand.hbm [shape: f32[1,128], index: 7, kind: output, shape index: {}]
  %s8 = sld [smem:[#allocation0]]
  $region38: #{tpu_custom_call.1} parent=0
    _
  %s10 = ssub.s32 1, %s8
  %s11 = scalar_select 0, %s10, %s8
  %v12 = vstv %s6
  %13 = vst [vmem:[#allocation2] sm:$0x1] %v12
  $region1: #{tpu_custom_call.1} parent=0
    #allocation3 [shape = 'u8[512]{0}', space=vmem, size = 0x400, scoped, tag = 'output window, operand 0, single buffered']
    #allocation4 [shape = 's32[1]{0}', space=sflag, size = 0x4, scoped, tag = 'scoped memory for tpu_custom_call.1']
    %14 = vsyncpa [#allocation4], 0
    // Predicated region
    $region2: #{tpu_custom_call.1} parent=1 // pred_check
      _
    $region3: #{tpu_custom_call.1} parent=1 // pred_check_branch
      %16 = sbr.rel (0) target = $region5
    $region4: #{tpu_custom_call.1} parent=1 // pred_region
      _
    $region5: #{tpu_custom_call.1} parent=1 // pred_fallthru
      _
    // Predicated region
    $region6: #{tpu_custom_call.1} parent=1 // pred_check
      _
    $region7: #{tpu_custom_call.1} parent=1 // pred_check_branch
      %18 = sbr.rel (0) target = $region9
    $region8: #{tpu_custom_call.1} parent=1 // pred_region
      _
    $region9: #{tpu_custom_call.1} parent=1 // pred_fallthru
      _
    // Predicated region
    $region10: #{tpu_custom_call.1} parent=1 // pred_check
      _
    $region11: #{tpu_custom_call.1} parent=1 // pred_check_branch
      %20 = sbr.rel (0) target = $region13
    $region12: #{tpu_custom_call.1} parent=1 // pred_region
      _
    $region13: #{tpu_custom_call.1} parent=1 // pred_fallthru
      _
    // Predicated region
    $region14: #{tpu_custom_call.1} parent=1 // pred_check
      _
    $region15: #{tpu_custom_call.1} parent=1 // pred_check_branch
      %22 = sbr.rel (0) target = $region17
    $region16: #{tpu_custom_call.1} parent=1 // pred_region
      _
    $region17: #{tpu_custom_call.1} parent=1 // pred_fallthru
      _
    // Predicated region
    $region18: #{tpu_custom_call.1} parent=1 // pred_check
      _
    $region19: #{tpu_custom_call.1} parent=1 // pred_check_branch
      %24 = sbr.rel (0) target = $region21
    $region20: #{tpu_custom_call.1} parent=1 // pred_region
      _
    $region21: #{tpu_custom_call.1} parent=1 // pred_fallthru
      _
    // Predicated region
    $region22: #{tpu_custom_call.1} parent=1 // pred_check
      _
    $region23: #{tpu_custom_call.1} parent=1 // pred_check_branch
      %26 = sbr.rel (0) target = $region25
    $region24: #{tpu_custom_call.1} parent=1 // pred_region
      _
    $region25: #{tpu_custom_call.1} parent=1 // pred_fallthru
      _
    // Predicated region
    $region26: #{tpu_custom_call.1} parent=1 // pred_check
      _
    $region27: #{tpu_custom_call.1} parent=1 // pred_check_branch
      %28 = sbr.rel (0) target = $region29
    $region28: #{tpu_custom_call.1} parent=1 // pred_region
      _
    $region29: #{tpu_custom_call.1} parent=1 // pred_fallthru
      _
    %v29 = vld [vmem:[%s0] sm:$0xff]
    %v30 = vld [vmem:[%s0 + $0x8] sm:$0x7f]
    %v31 = vld [vmem:[%s1] sm:$0xff]
    %v32 = vld [vmem:[%s1 + $0x8] sm:$0x3]
    %v33 = vld [vmem:[%s2] sm:$0xff]
    %v34 = vld [vmem:[%s2 + $0x8] sm:$0x3]
    %36 = vset.pattern.permute.xlu0 0
    %37 = vperm.xlu0 %36, %v33
    %v38 = vpop.permute.xlu0 %37
    %41 = vset.pattern.permute.xlu0 0
    %42 = vperm.xlu0 %41, %v34
    %v43 = vpop.permute.xlu0 %42
    %vm45 = vcmask 121856
    %v47 = vsel %vm45, %v31, 0
    %v50 = vsel %vm45, %v32, 0
    %vm52 = vcmask 1046528
    %v54 = vsel %vm52, %v30, 0
    %56 = vmatprep.subr.mxu0 0.0
    %57 = vmatpush1.msra.mxu0 %v29
    %58 = vmatprep.subr.mxu0 0.0
    %59 = vmatpush1.msra.mxu0 %v54
    %60 = vmatprep.subr.mxu0 0.0
    %61 = vmatpush1.msra.mxu0 0.0
    %62 = vmatprep.subr.mxu0 0.0
    %63 = vmatpush1.msra.mxu0 0.0
    %64 = vmatprep.subr.mxu0 0.0
    %65 = vmatpush1.msra.mxu0 0.0
    %66 = vmatprep.subr.mxu0 0.0
    %67 = vmatpush1.msra.mxu0 0.0
    %68 = vmatprep.subr.mxu0 0.0
    %69 = vmatpush1.msra.mxu0 0.0
    %70 = vmatprep.subr.mxu0 0.0
    %71 = vmatpush1.msra.mxu0 0.0
    %72 = vmatprep.subr.mxu0 0.0
    %73 = vmatpush1.msra.mxu0 0.0
    %74 = vmatprep.subr.mxu0 0.0
    %75 = vmatpush1.msra.mxu0 0.0
    %76 = vmatprep.subr.mxu0 0.0
    %77 = vmatpush1.msra.mxu0 0.0
    %78 = vmatprep.subr.mxu0 0.0
    %79 = vmatpush1.msra.mxu0 0.0
    %80 = vmatprep.subr.mxu0 0.0
    %81 = vmatpush1.msra.mxu0 0.0
    %82 = vmatprep.subr.mxu0 0.0
    %83 = vmatpush1.msra.mxu0 0.0
    %84 = vmatprep.subr.mxu0 0.0
    %85 = vmatpush1.msra.mxu0 0.0
    %86 = vmatprep.subr.mxu0 0.0
    %87 = vmatpush1.msra.mxu0 0.0
    %88 = vmatprep.subr.mxu0 0.0
    %89 = vmatpush1.msra.mxu0 0.0
    %90 = vmatprep.subr.mxu0 0.0
    %91 = vmatpush1.msra.mxu0 0.0
    %92 = vmatprep.subr.mxu0 0.0
    %93 = vmatpush1.msra.mxu0 0.0
    %94 = vmatprep.subr.mxu0 0.0
    %95 = vmatpush1.msra.mxu0 0.0
    %96 = vmatprep.subr.mxu0 0.0
    %97 = vmatpush1.msra.mxu0 0.0
    %98 = vmatprep.subr.mxu0 0.0
    %99 = vmatpush1.msra.mxu0 0.0
    %100 = vmatprep.subr.mxu0 0.0
    %101 = vmatpush1.msra.mxu0 0.0
    %102 = vmatprep.subr.mxu0 0.0
    %103 = vmatpush1.msra.mxu0 0.0
    %104 = vmatprep.subr.mxu0 0.0
    %105 = vmatpush1.msra.mxu0 0.0
    %106 = vmatprep.subr.mxu0 0.0
    %107 = vmatpush1.msra.mxu0 0.0
    %108 = vmatprep.subr.mxu0 0.0
    %109 = vmatpush1.msra.mxu0 0.0
    %110 = vmatprep.subr.mxu0 0.0
    %111 = vmatpush1.msra.mxu0 0.0
    %112 = vmatprep.subr.mxu0 0.0
    %113 = vmatpush1.msra.mxu0 0.0
    %114 = vmatprep.subr.mxu0 0.0
    %115 = vmatpush1.msra.mxu0 0.0
    %116 = vmatprep.subr.mxu0 0.0
    %117 = vmatpush1.msra.mxu0 0.0
    %118 = vmatprep.subr.mxu0 0.0
    %119 = vmatpush1.msra.mxu0 0.0
    %120 = vmatprep.mubr.f32.mxu0 0.0
    %121 = vmatmul.mubr.f32.gmra.mrb[0].mxu0 %v47
    %v122 = vpop.f32.mrb[0].mxu0
    %v123 = vadd.f32 %v38, %v122
    %v124 = vpop.f32.mrb[0].mxu0
    %125 = vmatprep.mubr.f32.mxu0 0.0
    %126 = vmatmul.mubr.f32.gmra.mrb[0].mxu0 %v50
    %v127 = vpop.f32.mrb[0].mxu0
    %v128 = vadd.f32 %v43, %v127
    %v129 = vpop.f32.mrb[0].mxu0
    %130 = vdwg.mxu0
    %v131 = vxor.u32 %v123, 2147483648
    %v132 = vxor.u32 %v128, 2147483648
    %v133 = vmul.f32 %v131, 1.442695
    %v134 = vpow.pop %v133
    %v135 = vmul.f32 %v132, 1.442695
    %v136 = vpow.pop %v135
    %v137 = vadd.f32 %v134, 1.0
    %v138 = vadd.f32 %v136, 1.0
    %v139 = vrcp.pop %v137
    %v140 = vmul.f32 1.0, %v139
    %v141 = vrcp.pop %v138
    %v142 = vmul.f32 1.0, %v141
    %v143 = vld [vmem:[%s3] sm:$0x3f]
    %v144 = vld [vmem:[%s4] sm:$0x3f]
    %146 = vset.pattern.permute.xlu0 0
    %147 = vperm.xlu0 %146, %v144
    %v148 = vpop.permute.xlu0 %147
    %vm150 = vcmask 80896
    %v152 = vsel %vm150, %v143, 0
    %vm154 = vcmask 1041408
    %v156 = vsel %vm154, %v142, 0
    %158 = vmatprep.subr.mxu0 0.0
    %159 = vmatpush1.msra.mxu0 %v140
    %160 = vmatprep.subr.mxu0 0.0
    %161 = vmatpush1.msra.mxu0 %v156
    %162 = vmatprep.subr.mxu0 0.0
    %163 = vmatpush1.msra.mxu0 0.0
    %164 = vmatprep.subr.mxu0 0.0
    %165 = vmatpush1.msra.mxu0 0.0
    %166 = vmatprep.subr.mxu0 0.0
    %167 = vmatpush1.msra.mxu0 0.0
    %168 = vmatprep.subr.mxu0 0.0
    %169 = vmatpush1.msra.mxu0 0.0
    %170 = vmatprep.subr.mxu0 0.0
    %171 = vmatpush1.msra.mxu0 0.0
    %172 = vmatprep.subr.mxu0 0.0
    %173 = vmatpush1.msra.mxu0 0.0
    %174 = vmatprep.subr.mxu0 0.0
    %175 = vmatpush1.msra.mxu0 0.0
    %176 = vmatprep.subr.mxu0 0.0
    %177 = vmatpush1.msra.mxu0 0.0
    %178 = vmatprep.subr.mxu0 0.0
    %179 = vmatpush1.msra.mxu0 0.0
    %180 = vmatprep.subr.mxu0 0.0
    %181 = vmatpush1.msra.mxu0 0.0
    %182 = vmatprep.subr.mxu0 0.0
    %183 = vmatpush1.msra.mxu0 0.0
    %184 = vmatprep.subr.mxu0 0.0
    %185 = vmatpush1.msra.mxu0 0.0
    %186 = vmatprep.subr.mxu0 0.0
    %187 = vmatpush1.msra.mxu0 0.0
    %188 = vmatprep.subr.mxu0 0.0
    %189 = vmatpush1.msra.mxu0 0.0
    %190 = vmatprep.subr.mxu0 0.0
    %191 = vmatpush1.msra.mxu0 0.0
    %192 = vmatprep.subr.mxu0 0.0
    %193 = vmatpush1.msra.mxu0 0.0
    %194 = vmatprep.subr.mxu0 0.0
    %195 = vmatpush1.msra.mxu0 0.0
    %196 = vmatprep.subr.mxu0 0.0
    %197 = vmatpush1.msra.mxu0 0.0
    %198 = vmatprep.subr.mxu0 0.0
    %199 = vmatpush1.msra.mxu0 0.0
    %200 = vmatprep.subr.mxu0 0.0
    %201 = vmatpush1.msra.mxu0 0.0
    %202 = vmatprep.subr.mxu0 0.0
    %203 = vmatpush1.msra.mxu0 0.0
    %204 = vmatprep.subr.mxu0 0.0
    %205 = vmatpush1.msra.mxu0 0.0
    %206 = vmatprep.subr.mxu0 0.0
    %207 = vmatpush1.msra.mxu0 0.0
    %208 = vmatprep.subr.mxu0 0.0
    %209 = vmatpush1.msra.mxu0 0.0
    %210 = vmatprep.subr.mxu0 0.0
    %211 = vmatpush1.msra.mxu0 0.0
    %212 = vmatprep.subr.mxu0 0.0
    %213 = vmatpush1.msra.mxu0 0.0
    %214 = vmatprep.subr.mxu0 0.0
    %215 = vmatpush1.msra.mxu0 0.0
    %216 = vmatprep.subr.mxu0 0.0
    %217 = vmatpush1.msra.mxu0 0.0
    %218 = vmatprep.subr.mxu0 0.0
    %219 = vmatpush1.msra.mxu0 0.0
    %220 = vmatprep.subr.mxu0 0.0
    %221 = vmatpush1.msra.mxu0 0.0
    %222 = vmatprep.mubr.f32.mxu0 0.0
    %223 = vmatmul.mubr.f32.gmra.mrb[0].mxu0 %v152
    %v224 = vpop.f32.mrb[0].mxu0
    %v225 = vadd.f32 %v148, %v224
    %v226 = vpop.f32.mrb[0].mxu0
    %227 = vdwg.mxu0
    %v228 = vxor.u32 %v225, 2147483648
    %v229 = vmul.f32 %v228, 1.442695
    %v230 = vpow.pop %v229
    %v231 = vadd.f32 %v230, 1.0
    %v232 = vrcp.pop %v231
    %v233 = vmul.f32 1.0, %v232
    %v234 = vld [vmem:[%s5] sm:$0x1]
    %v235 = vld [vmem:[#allocation2] sm:$0x1]
    %237 = vset.pattern.permute.xlu0 0
    %238 = vperm.xlu0 %237, %v235
    %v239 = vpop.permute.xlu0 %238
    %v241 = vlaneseq
    %v242 = vshrl.u32 %v241, 7
    %v243 = vsub.s32 0, %v242
    %v244 = vrot.slane %v239, %v243
    %vm245 = vcmask 48128
    %v247 = vsel %vm245, %v234, 0
    %vm249 = vcmask 1045504
    %v251 = vsel %vm249, %v233, 0
    %253 = vmatprep.subr.mxu0 0.0
    %254 = vmatpush1.msra.mxu0 %v251
    %255 = vmatprep.subr.mxu0 0.0
    %256 = vmatpush1.msra.mxu0 0.0
    %257 = vmatprep.subr.mxu0 0.0
    %258 = vmatpush1.msra.mxu0 0.0
    %259 = vmatprep.subr.mxu0 0.0
    %260 = vmatpush1.msra.mxu0 0.0
    %261 = vmatprep.subr.mxu0 0.0
    %262 = vmatpush1.msra.mxu0 0.0
    %263 = vmatprep.subr.mxu0 0.0
    %264 = vmatpush1.msra.mxu0 0.0
    %265 = vmatprep.subr.mxu0 0.0
    %266 = vmatpush1.msra.mxu0 0.0
    %267 = vmatprep.subr.mxu0 0.0
    %268 = vmatpush1.msra.mxu0 0.0
    %269 = vmatprep.subr.mxu0 0.0
    %270 = vmatpush1.msra.mxu0 0.0
    %271 = vmatprep.subr.mxu0 0.0
    %272 = vmatpush1.msra.mxu0 0.0
    %273 = vmatprep.subr.mxu0 0.0
    %274 = vmatpush1.msra.mxu0 0.0
    %275 = vmatprep.subr.mxu0 0.0
    %276 = vmatpush1.msra.mxu0 0.0
    %277 = vmatprep.subr.mxu0 0.0
    %278 = vmatpush1.msra.mxu0 0.0
    %279 = vmatprep.subr.mxu0 0.0
    %280 = vmatpush1.msra.mxu0 0.0
    %281 = vmatprep.subr.mxu0 0.0
    %282 = vmatpush1.msra.mxu0 0.0
    %283 = vmatprep.subr.mxu0 0.0
    %284 = vmatpush1.msra.mxu0 0.0
    %285 = vmatprep.subr.mxu0 0.0
    %286 = vmatpush1.msra.mxu0 0.0
    %287 = vmatprep.subr.mxu0 0.0
    %288 = vmatpush1.msra.mxu0 0.0
    %289 = vmatprep.subr.mxu0 0.0
    %290 = vmatpush1.msra.mxu0 0.0
    %291 = vmatprep.subr.mxu0 0.0
    %292 = vmatpush1.msra.mxu0 0.0
    %293 = vmatprep.subr.mxu0 0.0
    %294 = vmatpush1.msra.mxu0 0.0
    %295 = vmatprep.subr.mxu0 0.0
    %296 = vmatpush1.msra.mxu0 0.0
    %297 = vmatprep.subr.mxu0 0.0
    %298 = vmatpush1.msra.mxu0 0.0
    %299 = vmatprep.subr.mxu0 0.0
    %300 = vmatpush1.msra.mxu0 0.0
    %301 = vmatprep.subr.mxu0 0.0
    %302 = vmatpush1.msra.mxu0 0.0
    %303 = vmatprep.subr.mxu0 0.0
    %304 = vmatpush1.msra.mxu0 0.0
    %305 = vmatprep.subr.mxu0 0.0
    %306 = vmatpush1.msra.mxu0 0.0
    %307 = vmatprep.subr.mxu0 0.0
    %308 = vmatpush1.msra.mxu0 0.0
    %309 = vmatprep.subr.mxu0 0.0
    %310 = vmatpush1.msra.mxu0 0.0
    %311 = vmatprep.subr.mxu0 0.0
    %312 = vmatpush1.msra.mxu0 0.0
    %313 = vmatprep.subr.mxu0 0.0
    %314 = vmatpush1.msra.mxu0 0.0
    %315 = vmatprep.subr.mxu0 0.0
    %316 = vmatpush1.msra.mxu0 0.0
    %317 = vmatprep.mubr.f32.mxu0 0.0
    %318 = vmatmul.mubr.f32.gmra.mrb[0].mxu0 %v247
    %v319 = vpop.f32.mrb[0].mxu0
    %v320 = vadd.f32 %v244, %v319
    %v321 = vpop.f32.mrb[0].mxu0
    %322 = vdwg.mxu0
    %v323 = vxor.u32 %v320, 2147483648
    %v324 = vmul.f32 %v323, 1.442695
    %v325 = vpow.pop %v324
    %v326 = vadd.f32 %v325, 1.0
    %v327 = vrcp.pop %v326
    %v328 = vmul.f32 1.0, %v327
    %329 = vst [vmem:[#allocation3] sm:$0x1] %v328
    // Predicated region
    $region30: #{tpu_custom_call.1} parent=1 // pred_check
      _
    $region31: #{tpu_custom_call.1} parent=1 // pred_check_branch
      %331 = sbr.rel (0) target = $region33
    $region32: #{tpu_custom_call.1} parent=1 // pred_region
      %s333 = ssub.s32 16, 16
      %334 = vsyncadd [#allocation4], %s333
      %s336 = sshll.u32 [#allocation3], 4
      %s337 = int_to_ptr.vmem [resolvable:$true] %s336
      %339 = dma.vmem_to_hbm [thread:$0]  %s337, 16, %s7, [#allocation4]
    $region33: #{tpu_custom_call.1} parent=1 // pred_fallthru
      _
    // Predicated region
    $region34: #{tpu_custom_call.1} parent=1 // pred_check
      _
    $region35: #{tpu_custom_call.1} parent=1 // pred_check_branch
      %341 = sbr.rel (0) target = $region37
    $region36: #{tpu_custom_call.1} parent=1 // pred_region
      %342 = dma.done [#allocation4], 16
    $region37: #{tpu_custom_call.1} parent=1 // pred_fallthru
      _
    %343 = vsyncpa [#allocation4], 1

</llo_original>
